<compile_context>
chip_gen: v7x
topology: tpu7x:2x2x1
jax: 0.10.0
libtpu: 0.0.40
codegen_flags: <defaults>
</compile_context>

<pallas_src>
import functools

import jax
import jax.numpy as jnp
from jax.experimental import pallas as pl
from jax.experimental.pallas import tpu as pltpu


def _round_up(x: int, m: int) -> int:
    return (x + m - 1) // m * m


def _vmem_limit_bytes() -> int:
    """Generation-aware VMEM limit: ~3/4 of physical, capped at 100 MiB."""
    try:
        cap = int(pltpu.get_tpu_info().vmem_capacity_bytes)
    except Exception:
        cap = 64 * 1024 * 1024          # conservative: v7x has 64 MiB per TensorCore
    return int(min(cap * 3 // 4, 100 * 1024 * 1024))


def _resident_spec(shape):
    """Constant-index (grid-invariant) operand: keep it resident, single-buffered."""
    try:
        return pl.BlockSpec(shape, lambda j: (0, 0), pipeline_mode=pl.Buffered(1))
    except Exception:                   # pipeline_mode unavailable -> default buffering
        return pl.BlockSpec(shape, lambda j: (0, 0))


def _lightconv_kernel(xp_ref, xc_ref, xn_ref, w1_ref, b1_ref, taps_ref, w2_ref,
                      b2_ref, o_ref, y_ref, *, n_rows, batch, kernel_size,
                      padding_l, tile_rows, halo_rows):
    """One time-tile of fused linear1 -> lightweight conv -> linear2.

    Rows are the flattened (T*B) axis of the TBC input, so a shift of one time step
    is a shift of `batch` rows.

    xp_ref:   (halo_rows, C)   rows just before this tile (prev halo), input dtype
    xc_ref:   (tile_rows, C)   this tile's rows
    xn_ref:   (halo_rows, C)   rows just after this tile (next halo)
    w1_ref:   (C, C)           linear1 weight, (in, out) layout, compute dtype
    b1_ref:   (1, C)           f32
    taps_ref: (K, C)           softmaxed, head->channel expanded conv taps, f32
    w2_ref:   (C, out_dim)     linear2 weight, (in, out) layout, compute dtype
    b2_ref:   (1, out_dim)     f32
    o_ref:    (tile_rows, out_dim)
    y_ref:    (halo_rows + tile_rows + halo_rows, C) f32 scratch (linear1 output)
    """
    j = pl.program_id(0)
    cdt = w1_ref.dtype
    scratch_rows = tile_rows + 2 * halo_rows
    b1 = b1_ref[...]

    # linear1 on the MXU (f32 accumulation), written straight into the conv scratch
    # (prev halo | current tile | next halo) -- no value-level concatenate.
    y_ref[0:halo_rows, :] = (
        jnp.dot(xp_ref[...].astype(cdt), w1_ref[...],
                preferred_element_type=jnp.float32) + b1)
    y_ref[halo_rows:halo_rows + tile_rows, :] = (
        jnp.dot(xc_ref[...].astype(cdt), w1_ref[...],
                preferred_element_type=jnp.float32) + b1)
    y_ref[halo_rows + tile_rows:scratch_rows, :] = (
        jnp.dot(xn_ref[...].astype(cdt), w1_ref[...],
                preferred_element_type=jnp.float32) + b1)

    # Conv zero-padding, only where needed (interior tiles skip both branches):
    #   * rows before the sequence exist only in tile 0's prev-halo section,
    #   * rows past the end only appear in the last tile(s) (incl. clamped halos /
    #     partial edge blocks, whose fetched contents are garbage -> zeroed here).
    @pl.when(j == 0)
    def _():
        y_ref[0:halo_rows, :] = jnp.zeros((halo_rows, y_ref.shape[1]), jnp.float32)

    g0 = j * tile_rows - halo_rows                  # global flat row of scratch row 0

    @pl.when(g0 + scratch_rows > n_rows)
    def _():
        row = g0 + jax.lax.broadcasted_iota(jnp.int32, y_ref.shape, 0)
        y_ref[...] = jnp.where(row < n_rows, y_ref[...], 0.0)

    # Lightweight (head-shared depthwise) conv: shift by `batch` flat rows per tap.
    # Static ref slices of the scratch (no sublane-shifted value copies).
    base = halo_rows - padding_l * batch
    z = y_ref[pl.ds(base, tile_rows), :] * taps_ref[0:1, :]
    for k in range(1, kernel_size):
        z = z + y_ref[pl.ds(base + k * batch, tile_rows), :] * taps_ref[k:k + 1, :]

    # linear2 on the MXU (f32 accumulation).
    out = jnp.dot(z.astype(cdt), w2_ref[...],
                  preferred_element_type=jnp.float32) + b2_ref[...]
    o_ref[...] = out.astype(o_ref.dtype)


def prepare_lightconv_params(w1, b1, conv_weight, w2, b2, *,
                             compute_dtype=jnp.bfloat16):
    """One-time weight prep: (out,in)->(in,out) transpose + cast to the MXU compute
    dtype, so the per-call forward pays no HBM-side transpose/upcast."""
    C = w1.shape[1]
    out_dim = w2.shape[0]
    return {
        "w1t": jnp.asarray(w1, jnp.float32).T.astype(compute_dtype),   # (C, C)
        "b1": jnp.asarray(b1, jnp.float32).reshape(1, C),
        "conv_w": jnp.asarray(conv_weight, jnp.float32),               # (H, K)
        "w2t": jnp.asarray(w2, jnp.float32).T.astype(compute_dtype),   # (C, out_dim)
        "b2": jnp.asarray(b2, jnp.float32).reshape(1, out_dim),
    }


@functools.partial(jax.jit, static_argnames=("padding_l", "num_heads",
                                              "weight_softmax", "out_dtype",
                                              "tile_rows"))
def lightconv_layer_forward(x_tbc, params, *, padding_l, num_heads,
                            weight_softmax=True, out_dtype=None, tile_rows=None):
    """JAX/Pallas equivalent of LightconvLayer.forward (non-incremental path)."""
    T, B, C = x_tbc.shape
    assert C % num_heads == 0
    R = C // num_heads

    w1t, b1 = params["w1t"], params["b1"]
    w2t, b2 = params["w2t"], params["b2"]
    conv_w = params["conv_w"]
    K = conv_w.shape[1]
    out_dim = w2t.shape[1]
    compute_dtype = w1t.dtype
    if out_dtype is None:
        out_dtype = compute_dtype        # bf16 output by default: halves writeback
    assert 0 <= padding_l <= K - 1, "fairseq lightconv requires 0 <= padding_l < K"

    # Tiny (H, K) softmax + head -> channel expansion: glue, not the hot path.
    w = jax.nn.softmax(conv_w, axis=-1) if weight_softmax else conv_w
    # TODO(synk): weight_dropout is a training-time op; eval mode => identity.
    taps = jnp.repeat(w, R, axis=0).T.astype(jnp.float32)               # (K, C)

    # Flatten (T, B, C) -> (T*B, C): a FREE reshape (no transpose/pad HBM round trip).
    # A conv shift of one time step becomes a shift of B flat rows.
    n_rows = T * B
    x2 = x_tbc.reshape(n_rows, C)

    # Halo covers (K-1)*B rows on each side of a tile, 16-row aligned (bf16 packing).
    halo_rows = _round_up(max(K - 1, 1) * B, 16)
    assert n_rows >= halo_rows, "sequence too short for halo tiling"
    # TODO(synk): very short sequences (T*B < halo_rows) would need a padded fallback.

    # Generation-aware VMEM limit and tile size.
    vmem_limit = _vmem_limit_bytes()
    xbytes = jnp.dtype(x_tbc.dtype).itemsize
    cbytes = jnp.dtype(compute_dtype).itemsize
    obytes = jnp.dtype(out_dtype).itemsize
    if tile_rows is None:
        fixed = ((C * C + C * out_dim) * cbytes            # resident weights (1 buf)
                 + 4 * halo_rows * C * xbytes              # halo streams (2 x 2 bufs)
                 + (K + 2) * max(C, out_dim) * 4           # taps + biases
                 + 2 * halo_rows * C * 4)                  # scratch halo sections
        per_row = 2 * C * xbytes + 2 * out_dim * obytes + 4 * C
        budget = max(int(vmem_limit * 0.7) - fixed, per_row * halo_rows)
        tile_rows = max(halo_rows, (budget // per_row) // halo_rows * halo_rows)
        tile_rows = min(tile_rows, 4096)                   # bound per-step latency
    # Keep >= 2 grid steps when possible (v7x runs 2 TensorCores).
    if n_rows > halo_rows:
        tile_rows = min(tile_rows, _round_up(pl.cdiv(n_rows, 2), halo_rows))
    tile_rows = min(tile_rows, (n_rows // halo_rows) * halo_rows)
    tile_rows = max(halo_rows, tile_rows // halo_rows * halo_rows)

    hstep = tile_rows // halo_rows
    num_t = pl.cdiv(n_rows, tile_rows)
    nbh = pl.cdiv(n_rows, halo_rows)          # number of halo-sized row blocks

    kernel = functools.partial(
        _lightconv_kernel, n_rows=n_rows, batch=B, kernel_size=K,
        padding_l=padding_l, tile_rows=tile_rows, halo_rows=halo_rows)

    out = pl.pallas_call(
        kernel,
        grid=(num_t,),
        in_specs=[
            # prev halo / current tile / next halo (three views of the same rows;
            # halo indices are clamped at the edges and masked in-kernel)
            pl.BlockSpec((halo_rows, C), lambda j: (jnp.maximum(j * hstep - 1, 0), 0)),
            pl.BlockSpec((tile_rows, C), lambda j: (j, 0)),
            pl.BlockSpec((halo_rows, C),
                         lambda j: (jnp.minimum((j + 1) * hstep, nbh - 1), 0)),
            # grid-invariant operands: resident in VMEM, single-buffered
            _resident_spec((C, C)),
            _resident_spec((1, C)),
            _resident_spec((K, C)),
            _resident_spec((C, out_dim)),
            _resident_spec((1, out_dim)),
        ],
        out_specs=pl.BlockSpec((tile_rows, out_dim), lambda j: (j, 0)),
        out_shape=jax.ShapeDtypeStruct((n_rows, out_dim), out_dtype),
        scratch_shapes=[pltpu.VMEM((tile_rows + 2 * halo_rows, C), jnp.float32)],
        compiler_params=pltpu.CompilerParams(
            dimension_semantics=("parallel",),
            vmem_limit_bytes=vmem_limit,
        ),
    )(x2, x2, x2, w1t, b1, taps, w2t, b2)

    # free reshape back to the original TBC layout
    return out.reshape(T, B, out_dim)


def _reference(x_tbc, w1, b1, conv_weight, w2, b2, *, padding_l, num_heads,
               weight_softmax=True):
    """Pure-JAX reference implementing the exact PyTorch forward semantics (f32)."""
    T, B, C = x_tbc.shape
    R = C // num_heads
    K = conv_weight.shape[1]
    y = x_tbc @ w1.T + b1
    w = jax.nn.softmax(conv_weight, axis=-1) if weight_softmax else conv_weight
    wexp = jnp.repeat(w, R, axis=0)                               # (C, K)
    ypad = jnp.pad(y, ((padding_l, K - 1 - padding_l), (0, 0), (0, 0)))
    z = jnp.zeros_like(y)
    for k in range(K):
        z = z + ypad[k:k + T] * wexp[:, k][None, None, :]
    return z @ w2.T + b2


if __name__ == "__main__":
    # Small config consistent with LightconvLayer(input_size=32, kernel_size=4,
    # padding_l=3, weight_softmax=True, num_heads=4, with_linear=True).
    T, B, C = 20, 2, 32
    H, K, padding_l = 4, 4, 3
    out_dim = 32

    key = jax.random.PRNGKey(0)
    kx, kw1, kb1, kw2, kb2, kwc = jax.random.split(key, 6)

    x = jax.random.normal(kx, (T, B, C), dtype=jnp.float32)

    lim1 = (6.0 / (C + C)) ** 0.5
    w1 = jax.random.uniform(kw1, (C, C), jnp.float32, -lim1, lim1)
    b1 = 0.1 * jax.random.normal(kb1, (C,), jnp.float32)
    lim2 = (6.0 / (C + out_dim)) ** 0.5
    w2 = jax.random.uniform(kw2, (out_dim, C), jnp.float32, -lim2, lim2)
    b2 = 0.1 * jax.random.normal(kb2, (out_dim,), jnp.float32)
    limw = (6.0 / (H + K)) ** 0.5
    conv_w = jax.random.uniform(kwc, (H, K), jnp.float32, -limw, limw)

    ref = _reference(x, w1, b1, conv_w, w2, b2, padding_l=padding_l,
                     num_heads=H, weight_softmax=True)

    # 1) f32 compute path, forced small tile (3 time tiles: exercises the j==0 front
    #    mask, the tail mask, the clamped halo indices and partial edge blocks).
    params_f32 = prepare_lightconv_params(w1, b1, conv_w, w2, b2,
                                          compute_dtype=jnp.float32)
    out_f32 = jax.block_until_ready(lightconv_layer_forward(
        x, params_f32, padding_l=padding_l, num_heads=H, weight_softmax=True,
        out_dtype=jnp.float32, tile_rows=16))
    assert out_f32.shape == (T, B, out_dim)
    assert jnp.allclose(out_f32, ref, atol=1e-3, rtol=1e-3), "f32 kernel mismatch"

    # 2) bf16 compute (MXU-native), auto tile, f32 output; compare against a reference
    #    evaluated on bf16-rounded inputs (isolates the in-kernel rounding).
    ref_q = _reference(
        x.astype(jnp.bfloat16).astype(jnp.float32),
        w1.astype(jnp.bfloat16).astype(jnp.float32), b1, conv_w,
        w2.astype(jnp.bfloat16).astype(jnp.float32), b2,
        padding_l=padding_l, num_heads=H, weight_softmax=True)
    params_bf16 = prepare_lightconv_params(w1, b1, conv_w, w2, b2,
                                           compute_dtype=jnp.bfloat16)
    out_bf16 = jax.block_until_ready(lightconv_layer_forward(
        x, params_bf16, padding_l=padding_l, num_heads=H, weight_softmax=True,
        out_dtype=jnp.float32))
    assert jnp.allclose(out_bf16, ref_q, atol=5e-2, rtol=5e-2), "bf16 kernel mismatch"

    # 3) bf16 compute with default (bf16) output dtype, forced multi-tile grid.
    out_bf16_b = jax.block_until_ready(lightconv_layer_forward(
        x, params_bf16, padding_l=padding_l, num_heads=H, weight_softmax=True,
        tile_rows=16))
    assert out_bf16_b.dtype == jnp.bfloat16
    assert jnp.allclose(out_bf16_b.astype(jnp.float32), ref_q,
                        atol=7e-2, rtol=7e-2), "bf16-out kernel mismatch"

    print("KERNEL_OK")
</pallas_src>

<mosaic_0001>
module attributes {stable_mosaic.version = 11 : i64} {
  func.func @_lightconv_kernel(%arg0: i32, %arg1: memref<16x32xf32, #tpu.memory_space<vmem>>, %arg2: memref<16x32xf32, #tpu.memory_space<vmem>>, %arg3: memref<16x32xf32, #tpu.memory_space<vmem>>, %arg4: memref<32x32xf32, #tpu.memory_space<vmem>>, %arg5: memref<1x32xf32, #tpu.memory_space<vmem>>, %arg6: memref<4x32xf32, #tpu.memory_space<vmem>>, %arg7: memref<32x32xf32, #tpu.memory_space<vmem>>, %arg8: memref<1x32xf32, #tpu.memory_space<vmem>>, %arg9: memref<16x32xf32, #tpu.memory_space<vmem>>, %arg10: memref<48x32xf32, #tpu.memory_space<vmem>>) attributes {dimension_semantics = [#tpu.dimension_semantics<parallel>], iteration_bounds = array<i64: 3>, scalar_prefetch = 0 : i64, scratch_operands = 1 : i64, tpu.core_type = #tpu.core_type<tc>, window_params = [{transform_indices = @transform_0, window_bounds = array<i64: 16, 32>}, {transform_indices = @transform_1, window_bounds = array<i64: 16, 32>}, {transform_indices = @transform_2, window_bounds = array<i64: 16, 32>}, {pipeline_mode = #tpu.pipeline_mode<synchronous>, transform_indices = @transform_3, window_bounds = array<i64: 32, 32>}, {pipeline_mode = #tpu.pipeline_mode<synchronous>, transform_indices = @transform_4, window_bounds = array<i64: 1, 32>}, {pipeline_mode = #tpu.pipeline_mode<synchronous>, transform_indices = @transform_5, window_bounds = array<i64: 4, 32>}, {pipeline_mode = #tpu.pipeline_mode<synchronous>, transform_indices = @transform_6, window_bounds = array<i64: 32, 32>}, {pipeline_mode = #tpu.pipeline_mode<synchronous>, transform_indices = @transform_7, window_bounds = array<i64: 1, 32>}, {transform_indices = @transform_8, window_bounds = array<i64: 16, 32>}]} {
    %c0 = arith.constant 0 : index
    %c0_0 = arith.constant 0 : index
    %0 = vector.load %arg5[%c0, %c0_0] : memref<1x32xf32, #tpu.memory_space<vmem>>, vector<1x32xf32>
    %c0_1 = arith.constant 0 : index
    %c0_2 = arith.constant 0 : index
    %1 = vector.load %arg1[%c0_1, %c0_2] : memref<16x32xf32, #tpu.memory_space<vmem>>, vector<16x32xf32>
    %c0_3 = arith.constant 0 : index
    %c0_4 = arith.constant 0 : index
    %2 = vector.load %arg4[%c0_3, %c0_4] : memref<32x32xf32, #tpu.memory_space<vmem>>, vector<32x32xf32>
    %cst = arith.constant dense<0.000000e+00> : vector<16x32xf32>
    %3 = tpu.matmul %1, %2, %cst {dimension_numbers = #tpu.dot_dimension_numbers<[1], [0], [0], [1], [0, 0, 1, 1], [], []>} : vector<16x32xf32>, vector<32x32xf32>, vector<16x32xf32> -> vector<16x32xf32>
    %4 = vector.broadcast %0 : vector<1x32xf32> to vector<16x32xf32>
    %5 = arith.addf %3, %4 : vector<16x32xf32>
    %c0_5 = arith.constant 0 : index
    %c0_6 = arith.constant 0 : index
    %6 = vector.load %arg10[%c0_5, %c0_6] : memref<48x32xf32, #tpu.memory_space<vmem>>, vector<16x32xf32>
    tpu.vector_store %arg10[%c0_5, %c0_6], %5 {strides = array<i32>} : memref<48x32xf32, #tpu.memory_space<vmem>>, vector<16x32xf32>,
    %c0_7 = arith.constant 0 : index
    %c0_8 = arith.constant 0 : index
    %7 = vector.load %arg2[%c0_7, %c0_8] : memref<16x32xf32, #tpu.memory_space<vmem>>, vector<16x32xf32>
    %c0_9 = arith.constant 0 : index
    %c0_10 = arith.constant 0 : index
    %8 = vector.load %arg4[%c0_9, %c0_10] : memref<32x32xf32, #tpu.memory_space<vmem>>, vector<32x32xf32>
    %cst_11 = arith.constant dense<0.000000e+00> : vector<16x32xf32>
    %9 = tpu.matmul %7, %8, %cst_11 {dimension_numbers = #tpu.dot_dimension_numbers<[1], [0], [0], [1], [0, 0, 1, 1], [], []>} : vector<16x32xf32>, vector<32x32xf32>, vector<16x32xf32> -> vector<16x32xf32>
    %10 = vector.broadcast %0 : vector<1x32xf32> to vector<16x32xf32>
    %11 = arith.addf %9, %10 : vector<16x32xf32>
    %c16 = arith.constant 16 : index
    %c0_12 = arith.constant 0 : index
    %12 = vector.load %arg10[%c16, %c0_12] : memref<48x32xf32, #tpu.memory_space<vmem>>, vector<16x32xf32>
    tpu.vector_store %arg10[%c16, %c0_12], %11 {strides = array<i32>} : memref<48x32xf32, #tpu.memory_space<vmem>>, vector<16x32xf32>,
    %c0_13 = arith.constant 0 : index
    %c0_14 = arith.constant 0 : index
    %13 = vector.load %arg3[%c0_13, %c0_14] : memref<16x32xf32, #tpu.memory_space<vmem>>, vector<16x32xf32>
    %c0_15 = arith.constant 0 : index
    %c0_16 = arith.constant 0 : index
    %14 = vector.load %arg4[%c0_15, %c0_16] : memref<32x32xf32, #tpu.memory_space<vmem>>, vector<32x32xf32>
    %cst_17 = arith.constant dense<0.000000e+00> : vector<16x32xf32>
    %15 = tpu.matmul %13, %14, %cst_17 {dimension_numbers = #tpu.dot_dimension_numbers<[1], [0], [0], [1], [0, 0, 1, 1], [], []>} : vector<16x32xf32>, vector<32x32xf32>, vector<16x32xf32> -> vector<16x32xf32>
    %16 = vector.broadcast %0 : vector<1x32xf32> to vector<16x32xf32>
    %17 = arith.addf %15, %16 : vector<16x32xf32>
    %c32 = arith.constant 32 : index
    %c0_18 = arith.constant 0 : index
    %18 = vector.load %arg10[%c32, %c0_18] : memref<48x32xf32, #tpu.memory_space<vmem>>, vector<16x32xf32>
    tpu.vector_store %arg10[%c32, %c0_18], %17 {strides = array<i32>} : memref<48x32xf32, #tpu.memory_space<vmem>>, vector<16x32xf32>,
    %c0_i32 = arith.constant 0 : i32
    %19 = arith.cmpi eq, %arg0, %c0_i32 : i32
    %20 = arith.extui %19 : i1 to i32
    %c0_i32_19 = arith.constant 0 : i32
    %21 = arith.cmpi ne, %20, %c0_i32_19 : i32
    scf.if %21 {
      %cst_39 = arith.constant 0.000000e+00 : f32
      %53 = vector.broadcast %cst_39 : f32 to vector<16x32xf32>
      %c0_40 = arith.constant 0 : index
      %c0_41 = arith.constant 0 : index
      %54 = vector.load %arg10[%c0_40, %c0_41] : memref<48x32xf32, #tpu.memory_space<vmem>>, vector<16x32xf32>
      tpu.vector_store %arg10[%c0_40, %c0_41], %53 {strides = array<i32>} : memref<48x32xf32, #tpu.memory_space<vmem>>, vector<16x32xf32>,
    } else {
    }
    %c16_i32 = arith.constant 16 : i32
    %22 = arith.muli %arg0, %c16_i32 : i32
    %c16_i32_20 = arith.constant 16 : i32
    %23 = arith.subi %22, %c16_i32_20 : i32
    %c48_i32 = arith.constant 48 : i32
    %24 = arith.addi %23, %c48_i32 : i32
    %c40_i32 = arith.constant 40 : i32
    %25 = arith.cmpi sgt, %24, %c40_i32 : i32
    %26 = arith.extui %25 : i1 to i32
    %c0_i32_21 = arith.constant 0 : i32
    %27 = arith.cmpi ne, %26, %c0_i32_21 : i32
    scf.if %27 {
      %53 = tpu.iota {dimensions = array<i32: 0>} : vector<48x32xi32>
      %54 = vector.broadcast %23 : i32 to vector<48x32xi32>
      %55 = arith.addi %54, %53 : vector<48x32xi32>
      %c40_i32_39 = arith.constant 40 : i32
      %56 = vector.broadcast %c40_i32_39 : i32 to vector<48x32xi32>
      %57 = arith.cmpi slt, %55, %56 : vector<48x32xi32>
      %c0_40 = arith.constant 0 : index
      %c0_41 = arith.constant 0 : index
      %58 = vector.load %arg10[%c0_40, %c0_41] : memref<48x32xf32, #tpu.memory_space<vmem>>, vector<48x32xf32>
      %cst_42 = arith.constant 0.000000e+00 : f32
      %59 = vector.broadcast %cst_42 : f32 to vector<48x32xf32>
      %60 = arith.select %57, %58, %59 : vector<48x32xi1>, vector<48x32xf32>
      %c0_43 = arith.constant 0 : index
      %c0_44 = arith.constant 0 : index
      %61 = vector.load %arg10[%c0_43, %c0_44] : memref<48x32xf32, #tpu.memory_space<vmem>>, vector<48x32xf32>
      tpu.vector_store %arg10[%c0_43, %c0_44], %60 {strides = array<i32>} : memref<48x32xf32, #tpu.memory_space<vmem>>, vector<48x32xf32>,
    } else {
    }
    %c10 = arith.constant 10 : index
    %c0_22 = arith.constant 0 : index
    %28 = vector.load %arg10[%c10, %c0_22] : memref<48x32xf32, #tpu.memory_space<vmem>>, vector<16x32xf32>
    %c0_23 = arith.constant 0 : index
    %c0_24 = arith.constant 0 : index
    %29 = vector.load %arg6[%c0_23, %c0_24] : memref<4x32xf32, #tpu.memory_space<vmem>>, vector<1x32xf32>
    %30 = vector.broadcast %29 : vector<1x32xf32> to vector<16x32xf32>
    %31 = arith.mulf %28, %30 : vector<16x32xf32>
    %c12 = arith.constant 12 : index
    %c0_25 = arith.constant 0 : index
    %32 = vector.load %arg10[%c12, %c0_25] : memref<48x32xf32, #tpu.memory_space<vmem>>, vector<16x32xf32>
    %c1 = arith.constant 1 : index
    %c0_26 = arith.constant 0 : index
    %33 = vector.load %arg6[%c1, %c0_26] : memref<4x32xf32, #tpu.memory_space<vmem>>, vector<1x32xf32>
    %34 = vector.broadcast %33 : vector<1x32xf32> to vector<16x32xf32>
    %35 = arith.mulf %32, %34 : vector<16x32xf32>
    %36 = arith.addf %31, %35 : vector<16x32xf32>
    %c14 = arith.constant 14 : index
    %c0_27 = arith.constant 0 : index
    %37 = vector.load %arg10[%c14, %c0_27] : memref<48x32xf32, #tpu.memory_space<vmem>>, vector<16x32xf32>
    %c2 = arith.constant 2 : index
    %c0_28 = arith.constant 0 : index
    %38 = vector.load %arg6[%c2, %c0_28] : memref<4x32xf32, #tpu.memory_space<vmem>>, vector<1x32xf32>
    %39 = vector.broadcast %38 : vector<1x32xf32> to vector<16x32xf32>
    %40 = arith.mulf %37, %39 : vector<16x32xf32>
    %41 = arith.addf %36, %40 : vector<16x32xf32>
    %c16_29 = arith.constant 16 : index
    %c0_30 = arith.constant 0 : index
    %42 = vector.load %arg10[%c16_29, %c0_30] : memref<48x32xf32, #tpu.memory_space<vmem>>, vector<16x32xf32>
    %c3 = arith.constant 3 : index
    %c0_31 = arith.constant 0 : index
    %43 = vector.load %arg6[%c3, %c0_31] : memref<4x32xf32, #tpu.memory_space<vmem>>, vector<1x32xf32>
    %44 = vector.broadcast %43 : vector<1x32xf32> to vector<16x32xf32>
    %45 = arith.mulf %42, %44 : vector<16x32xf32>
    %46 = arith.addf %41, %45 : vector<16x32xf32>
    %c0_32 = arith.constant 0 : index
    %c0_33 = arith.constant 0 : index
    %47 = vector.load %arg7[%c0_32, %c0_33] : memref<32x32xf32, #tpu.memory_space<vmem>>, vector<32x32xf32>
    %cst_34 = arith.constant dense<0.000000e+00> : vector<16x32xf32>
    %48 = tpu.matmul %46, %47, %cst_34 {dimension_numbers = #tpu.dot_dimension_numbers<[1], [0], [0], [1], [0, 0, 1, 1], [], []>} : vector<16x32xf32>, vector<32x32xf32>, vector<16x32xf32> -> vector<16x32xf32>
    %c0_35 = arith.constant 0 : index
    %c0_36 = arith.constant 0 : index
    %49 = vector.load %arg8[%c0_35, %c0_36] : memref<1x32xf32, #tpu.memory_space<vmem>>, vector<1x32xf32>
    %50 = vector.broadcast %49 : vector<1x32xf32> to vector<16x32xf32>
    %51 = arith.addf %48, %50 : vector<16x32xf32>
    %c0_37 = arith.constant 0 : index
    %c0_38 = arith.constant 0 : index
    %52 = vector.load %arg9[%c0_37, %c0_38] : memref<16x32xf32, #tpu.memory_space<vmem>>, vector<16x32xf32>
    tpu.vector_store %arg9[%c0_37, %c0_38], %51 {strides = array<i32>} : memref<16x32xf32, #tpu.memory_space<vmem>>, vector<16x32xf32>,
    return
  }
  func.func @transform_0(%arg0: i32) -> (i32, i32) {
    %c1_i32 = arith.constant 1 : i32
    %0 = arith.muli %arg0, %c1_i32 : i32
    %c1_i32_0 = arith.constant 1 : i32
    %1 = arith.subi %0, %c1_i32_0 : i32
    %c0_i32 = arith.constant 0 : i32
    %2 = arith.maxsi %1, %c0_i32 : i32
    %c0_i32_1 = arith.constant 0 : i32
    %c0_i32_2 = arith.constant 0 : i32
    return %2, %c0_i32_1 : i32, i32
  }
  func.func @transform_1(%arg0: i32) -> (i32, i32) {
    %c0_i32 = arith.constant 0 : i32
    %c0_i32_0 = arith.constant 0 : i32
    return %arg0, %c0_i32 : i32, i32
  }
  func.func @transform_2(%arg0: i32) -> (i32, i32) {
    %c1_i32 = arith.constant 1 : i32
    %0 = arith.addi %arg0, %c1_i32 : i32
    %c1_i32_0 = arith.constant 1 : i32
    %1 = arith.muli %0, %c1_i32_0 : i32
    %c2_i32 = arith.constant 2 : i32
    %2 = arith.minsi %1, %c2_i32 : i32
    %c0_i32 = arith.constant 0 : i32
    %c0_i32_1 = arith.constant 0 : i32
    return %2, %c0_i32 : i32, i32
  }
  func.func @transform_3(%arg0: i32) -> (i32, i32) {
    %c0_i32 = arith.constant 0 : i32
    %c0_i32_0 = arith.constant 0 : i32
    %c0_i32_1 = arith.constant 0 : i32
    return %c0_i32, %c0_i32_0 : i32, i32
  }
  func.func @transform_4(%arg0: i32) -> (i32, i32) {
    %c0_i32 = arith.constant 0 : i32
    %c0_i32_0 = arith.constant 0 : i32
    %c0_i32_1 = arith.constant 0 : i32
    return %c0_i32, %c0_i32_0 : i32, i32
  }
  func.func @transform_5(%arg0: i32) -> (i32, i32) {
    %c0_i32 = arith.constant 0 : i32
    %c0_i32_0 = arith.constant 0 : i32
    %c0_i32_1 = arith.constant 0 : i32
    return %c0_i32, %c0_i32_0 : i32, i32
  }
  func.func @transform_6(%arg0: i32) -> (i32, i32) {
    %c0_i32 = arith.constant 0 : i32
    %c0_i32_0 = arith.constant 0 : i32
    %c0_i32_1 = arith.constant 0 : i32
    return %c0_i32, %c0_i32_0 : i32, i32
  }
  func.func @transform_7(%arg0: i32) -> (i32, i32) {
    %c0_i32 = arith.constant 0 : i32
    %c0_i32_0 = arith.constant 0 : i32
    %c0_i32_1 = arith.constant 0 : i32
    return %c0_i32, %c0_i32_0 : i32, i32
  }
  func.func @transform_8(%arg0: i32) -> (i32, i32) {
    %c0_i32 = arith.constant 0 : i32
    %c0_i32_0 = arith.constant 0 : i32
    return %arg0, %c0_i32 : i32, i32
  }
}

</mosaic_0001>

<llo_original>
// kernel: lightconv_layer_forward.1
$region0: #{lightconv_layer_forward.1}
  #allocation0 [shape = 'u32[]', space=smem, size = 0x4, offset = 0x4, fixed_abs, tag = 'smem constant byte address 0x4 - core index']
  #allocation1 [shape = 'u32[144,128]{1,0:T(1,128)}', space=vmem, size = 0x12000, scoped, tag = 'internal scratch']
  #allocation2 [shape = 'f32[48,32]{1,0:T(8,128)}', space=vmem, size = 0x6000, scoped, tag = 'scratch operand']
  %s0 = inlined_call_operand.vmem [shape: f32[40,32], index: 0, kind: input, shape index: {}, may-alias: {0,1,2}]
  %s1 = inlined_call_operand.vmem [shape: f32[40,32], index: 1, kind: input, shape index: {}, may-alias: {0,1,2}]
  %s2 = inlined_call_operand.vmem [shape: f32[40,32], index: 2, kind: input, shape index: {}, may-alias: {0,1,2}]
  %s3 = inlined_call_operand.vmem [shape: f32[32,32], index: 3, kind: input, shape index: {}]
  %s4 = inlined_call_operand.vmem [shape: f32[1,32], index: 4, kind: input, shape index: {}]
  %s5 = inlined_call_operand.vmem [shape: f32[4,32], index: 5, kind: input, shape index: {}]
  %s6 = inlined_call_operand.hbm [shape: f32[32,32], index: 6, kind: input, shape index: {}]
  %s7 = inlined_call_operand.vmem [shape: f32[1,32], index: 7, kind: input, shape index: {}]
  %s8 = inlined_call_operand.hbm [shape: f32[40,32], index: 8, kind: output, shape index: {}]
  %s9 = sld [smem:[#allocation0]]
  $region77: #{lightconv_layer_forward.1} parent=0
    _
  %s11 = ssub.s32 1, %s9
  %s12 = scalar_select 0, %s11, %s9
  $region1: #{lightconv_layer_forward.1} parent=0
    #allocation3 [shape = 'u8[16384]{0}', space=vmem, size = 0x4000, scoped, tag = 'input window, operand 6, single buffered']
    #allocation4 [shape = 's32[2]{0}', space=sflag, size = 0x8, scoped, tag = 'scoped memory for lightconv_layer_forward.1']
    #allocation5 [shape = 's32[2]{0}', space=sflag, size = 0x8, scoped, tag = 'scoped memory for lightconv_layer_forward.1']
    #allocation6 [shape = 'u8[16384]{0}', space=vmem, size = 0x4000, scoped, tag = 'output window, operand 0']
    %13 = vsyncpa [#allocation4], 0
    %14 = vsyncpa [#allocation5], 0
    %s15 = scalar_lea.sflag [#allocation5], 1
    %16 = vsyncpa %s15, 0
    loop: start=0, step=1, limit=5
    $region2: #{lightconv_layer_forward.1} parent=1 // loop_pre_header
      _
    $region3: #{lightconv_layer_forward.1} parent=1 // loop_header
      %s18 = sphi 0, %s22
      %p19 = scmp.ge.s32.totalorder %s18, 5
      %s34 = sphi 0, %s36
      %s37 = sphi 0, %s34
      %s38 = sphi 0, %s37
      %s54 = sphi 0, %s38
      %s60 = sphi 0, %s62
      %s63 = sphi 0, %s60
      %s64 = sphi 0, %s63
      %s80 = sphi 0, %s64
      %s92 = sphi 0, %s94
      %s95 = sphi 0, %s92
      %s96 = sphi 0, %s95
      %s112 = sphi 0, %s96
      %s116 = sphi 0, %s116
      %s118 = sphi 0, %s116
      %s119 = sphi 0, %s118
      %s133 = sphi 0, %s119
      %s137 = sphi 0, %s137
      %s139 = sphi 0, %s137
      %s140 = sphi 0, %s139
      %s154 = sphi 0, %s140
      %s158 = sphi 0, %s158
      %s160 = sphi 0, %s158
      %s161 = sphi 0, %s160
      %s175 = sphi 0, %s161
      %s179 = sphi 0, %s179
      %s181 = sphi 0, %s179
      %s182 = sphi 0, %s181
      %s196 = sphi 0, %s182
      %s200 = sphi 0, %s200
      %s202 = sphi 0, %s200
      %s203 = sphi 0, %s202
      %s217 = sphi 0, %s203
      %s223 = sphi 0, %s225
      %s226 = sphi 0, %s223
      %s227 = sphi 0, %s226
      %s243 = sphi 0, %s227
    $region4: #{lightconv_layer_forward.1} parent=1 // loop_header_branch
      %21 = sbr.rel (%p19) target = $region8
    $region5: #{lightconv_layer_forward.1} parent=1 // loop_body
      %s23 = ssub.s32 %s18, 1
      %s24 = ssub.s32 %s18, 2
      %s25 = sadd.s32 %s18, 1
      %s26 = ssub.s32 %s18, 1
      %p27 = scmp.gt.s32.totalorder %s26, 0
      %s28 = scalar_select %p27, %s26, 0
      %s29 = ssub.s32 %s25, 1
      %p30 = scmp.gt.s32.totalorder %s29, 0
      %s31 = scalar_select %p30, %s29, 0
      %s32 = ssub.s32 %s28, %s31
      %p33 = scmp.eq.s32.totalorder %s32, 0
      %s35 = sadd.s32 %s34, 1
      %s36 = scalar_select %p33, %s34, %s35
      %p39 = pneg %p33
      %p40 = scmp.eq.s32.totalorder %s18, 2
      %p41 = por %p39, %p40
      %p42 = scmp.ne.s32.totalorder %s34, %s37
      %p43 = scmp.eq.s32.totalorder %s18, 0
      %p44 = por %p42, %p43
      %p45 = scmp.ne.s32.totalorder %s34, %s37
      %p46 = scmp.eq.s32.totalorder %s23, 2
      %p47 = por %p45, %p46
      %p48 = scmp.ne.s32.totalorder %s37, %s38
      %p49 = scmp.eq.s32.totalorder %s23, 0
      %p50 = por %p48, %p49
      %p51 = scmp.ne.s32.totalorder %s37, %s38
      %p52 = scmp.eq.s32.totalorder %s24, 2
      %p53 = por %p51, %p52
      %p55 = scmp.ne.s32.totalorder %s38, %s54
      %p56 = scmp.eq.s32.totalorder %s24, 0
      %p57 = por %p55, %p56
      %s58 = ssub.s32 %s18, %s25
      %p59 = scmp.eq.s32.totalorder %s58, 0
      %s61 = sadd.s32 %s60, 1
      %s62 = scalar_select %p59, %s60, %s61
      %p65 = pneg %p59
      %p66 = scmp.eq.s32.totalorder %s18, 2
      %p67 = por %p65, %p66
      %p68 = scmp.ne.s32.totalorder %s60, %s63
      %p69 = scmp.eq.s32.totalorder %s18, 0
      %p70 = por %p68, %p69
      %p71 = scmp.ne.s32.totalorder %s60, %s63
      %p72 = scmp.eq.s32.totalorder %s23, 2
      %p73 = por %p71, %p72
      %p74 = scmp.ne.s32.totalorder %s63, %s64
      %p75 = scmp.eq.s32.totalorder %s23, 0
      %p76 = por %p74, %p75
      %p77 = scmp.ne.s32.totalorder %s63, %s64
      %p78 = scmp.eq.s32.totalorder %s24, 2
      %p79 = por %p77, %p78
      %p81 = scmp.ne.s32.totalorder %s64, %s80
      %p82 = scmp.eq.s32.totalorder %s24, 0
      %p83 = por %p81, %p82
      %s84 = sadd.s32 %s18, 1
      %p85 = scmp.lt.s32.totalorder %s84, 2
      %s86 = scalar_select %p85, %s84, 2
      %s87 = sadd.s32 %s25, 1
      %p88 = scmp.lt.s32.totalorder %s87, 2
      %s89 = scalar_select %p88, %s87, 2
      %s90 = ssub.s32 %s86, %s89
      %p91 = scmp.eq.s32.totalorder %s90, 0
      %s93 = sadd.s32 %s92, 1
      %s94 = scalar_select %p91, %s92, %s93
      %p97 = pneg %p91
      %p98 = scmp.eq.s32.totalorder %s18, 2
      %p99 = por %p97, %p98
      %p100 = scmp.ne.s32.totalorder %s92, %s95
      %p101 = scmp.eq.s32.totalorder %s18, 0
      %p102 = por %p100, %p101
      %p103 = scmp.ne.s32.totalorder %s92, %s95
      %p104 = scmp.eq.s32.totalorder %s23, 2
      %p105 = por %p103, %p104
      %p106 = scmp.ne.s32.totalorder %s95, %s96
      %p107 = scmp.eq.s32.totalorder %s23, 0
      %p108 = por %p106, %p107
      %p109 = scmp.ne.s32.totalorder %s95, %s96
      %p110 = scmp.eq.s32.totalorder %s24, 2
      %p111 = por %p109, %p110
      %p113 = scmp.ne.s32.totalorder %s96, %s112
      %p114 = scmp.eq.s32.totalorder %s24, 0
      %p115 = por %p113, %p114
      %s117 = sadd.s32 %s116, 1
      %p120 = scmp.eq.s32.totalorder %s18, 2
      %p121 = scmp.ne.s32.totalorder %s116, %s118
      %p122 = scmp.eq.s32.totalorder %s18, 0
      %p123 = por %p121, %p122
      %p124 = scmp.ne.s32.totalorder %s116, %s118
      %p125 = scmp.eq.s32.totalorder %s23, 2
      %p126 = por %p124, %p125
      %p127 = scmp.ne.s32.totalorder %s118, %s119
      %p128 = scmp.eq.s32.totalorder %s23, 0
      %p129 = por %p127, %p128
      %p130 = scmp.ne.s32.totalorder %s118, %s119
      %p131 = scmp.eq.s32.totalorder %s24, 2
      %p132 = por %p130, %p131
      %p134 = scmp.ne.s32.totalorder %s119, %s133
      %p135 = scmp.eq.s32.totalorder %s24, 0
      %p136 = por %p134, %p135
      %s138 = sadd.s32 %s137, 1
      %p141 = scmp.eq.s32.totalorder %s18, 2
      %p142 = scmp.ne.s32.totalorder %s137, %s139
      %p143 = scmp.eq.s32.totalorder %s18, 0
      %p144 = por %p142, %p143
      %p145 = scmp.ne.s32.totalorder %s137, %s139
      %p146 = scmp.eq.s32.totalorder %s23, 2
      %p147 = por %p145, %p146
      %p148 = scmp.ne.s32.totalorder %s139, %s140
      %p149 = scmp.eq.s32.totalorder %s23, 0
      %p150 = por %p148, %p149
      %p151 = scmp.ne.s32.totalorder %s139, %s140
      %p152 = scmp.eq.s32.totalorder %s24, 2
      %p153 = por %p151, %p152
      %p155 = scmp.ne.s32.totalorder %s140, %s154
      %p156 = scmp.eq.s32.totalorder %s24, 0
      %p157 = por %p155, %p156
      %s159 = sadd.s32 %s158, 1
      %p162 = scmp.eq.s32.totalorder %s18, 2
      %p163 = scmp.ne.s32.totalorder %s158, %s160
      %p164 = scmp.eq.s32.totalorder %s18, 0
      %p165 = por %p163, %p164
      %p166 = scmp.ne.s32.totalorder %s158, %s160
      %p167 = scmp.eq.s32.totalorder %s23, 2
      %p168 = por %p166, %p167
      %p169 = scmp.ne.s32.totalorder %s160, %s161
      %p170 = scmp.eq.s32.totalorder %s23, 0
      %p171 = por %p169, %p170
      %p172 = scmp.ne.s32.totalorder %s160, %s161
      %p173 = scmp.eq.s32.totalorder %s24, 2
      %p174 = por %p172, %p173
      %p176 = scmp.ne.s32.totalorder %s161, %s175
      %p177 = scmp.eq.s32.totalorder %s24, 0
      %p178 = por %p176, %p177
      %s180 = sadd.s32 %s179, 1
      %p183 = scmp.eq.s32.totalorder %s18, 2
      %p184 = scmp.ne.s32.totalorder %s179, %s181
      %p185 = scmp.eq.s32.totalorder %s18, 0
      %p186 = por %p184, %p185
      %p187 = scmp.ne.s32.totalorder %s179, %s181
      %p188 = scmp.eq.s32.totalorder %s23, 2
      %p189 = por %p187, %p188
      %p190 = scmp.ne.s32.totalorder %s181, %s182
      %p191 = scmp.eq.s32.totalorder %s23, 0
      %p192 = por %p190, %p191
      %p193 = scmp.ne.s32.totalorder %s181, %s182
      %p194 = scmp.eq.s32.totalorder %s24, 2
      %p195 = por %p193, %p194
      %p197 = scmp.ne.s32.totalorder %s182, %s196
      %p198 = scmp.eq.s32.totalorder %s24, 0
      %p199 = por %p197, %p198
      %s201 = sadd.s32 %s200, 1
      %p204 = scmp.eq.s32.totalorder %s18, 2
      %p205 = scmp.ne.s32.totalorder %s200, %s202
      %p206 = scmp.eq.s32.totalorder %s18, 0
      %p207 = por %p205, %p206
      %p208 = scmp.ne.s32.totalorder %s200, %s202
      %p209 = scmp.eq.s32.totalorder %s23, 2
      %p210 = por %p208, %p209
      %p211 = scmp.ne.s32.totalorder %s202, %s203
      %p212 = scmp.eq.s32.totalorder %s23, 0
      %p213 = por %p211, %p212
      %p214 = scmp.ne.s32.totalorder %s202, %s203
      %p215 = scmp.eq.s32.totalorder %s24, 2
      %p216 = por %p214, %p215
      %p218 = scmp.ne.s32.totalorder %s203, %s217
      %p219 = scmp.eq.s32.totalorder %s24, 0
      %p220 = por %p218, %p219
      %s221 = ssub.s32 %s18, %s25
      %p222 = scmp.eq.s32.totalorder %s221, 0
      %s224 = sadd.s32 %s223, 1
      %s225 = scalar_select %p222, %s223, %s224
      %p228 = pneg %p222
      %p229 = scmp.eq.s32.totalorder %s18, 2
      %p230 = por %p228, %p229
      %p231 = scmp.ne.s32.totalorder %s223, %s226
      %p232 = scmp.eq.s32.totalorder %s18, 0
      %p233 = por %p231, %p232
      %p234 = scmp.ne.s32.totalorder %s223, %s226
      %p235 = scmp.eq.s32.totalorder %s23, 2
      %p236 = por %p234, %p235
      %p237 = scmp.ne.s32.totalorder %s226, %s227
      %p238 = scmp.eq.s32.totalorder %s23, 0
      %p239 = por %p237, %p238
      %p240 = scmp.ne.s32.totalorder %s226, %s227
      %p241 = scmp.eq.s32.totalorder %s24, 2
      %p242 = por %p240, %p241
      %p244 = scmp.ne.s32.totalorder %s227, %s243
      %p245 = scmp.eq.s32.totalorder %s24, 0
      %p246 = por %p244, %p245
      %p247 = scmp.le.s32.totalorder 1, %s18
      %p248 = scmp.lt.s32.totalorder %s18, 4
      %p249 = pnand %p247, %p248
      %p250 = pneg %p249
      // Predicated region
      $region9: #{lightconv_layer_forward.1} parent=5 // pred_check
        _
      $region10: #{lightconv_layer_forward.1} parent=5 // pred_check_branch
        %252 = sbr.rel (%p249) target = $region12
      $region11: #{lightconv_layer_forward.1} parent=5 // pred_region
        %s253 = ssub.s32 %s18, 1
        // Predicated region
        $region13: #{lightconv_layer_forward.1} parent=11 // pred_check
          %p254 = pneg %p129
        $region14: #{lightconv_layer_forward.1} parent=11 // pred_check_branch
          %256 = sbr.rel (%p254) target = $region16
        $region15: #{lightconv_layer_forward.1} parent=11 // pred_region
          _
        $region16: #{lightconv_layer_forward.1} parent=11 // pred_fallthru
          _
        // Predicated region
        $region17: #{lightconv_layer_forward.1} parent=11 // pred_check
          %p257 = pneg %p150
        $region18: #{lightconv_layer_forward.1} parent=11 // pred_check_branch
          %259 = sbr.rel (%p257) target = $region20
        $region19: #{lightconv_layer_forward.1} parent=11 // pred_region
          _
        $region20: #{lightconv_layer_forward.1} parent=11 // pred_fallthru
          _
        // Predicated region
        $region21: #{lightconv_layer_forward.1} parent=11 // pred_check
          %p260 = pneg %p171
        $region22: #{lightconv_layer_forward.1} parent=11 // pred_check_branch
          %262 = sbr.rel (%p260) target = $region24
        $region23: #{lightconv_layer_forward.1} parent=11 // pred_region
          _
        $region24: #{lightconv_layer_forward.1} parent=11 // pred_fallthru
          _
        // Predicated region
        $region25: #{lightconv_layer_forward.1} parent=11 // pred_check
          %p263 = pneg %p192
        $region26: #{lightconv_layer_forward.1} parent=11 // pred_check_branch
          %265 = sbr.rel (%p263) target = $region28
        $region27: #{lightconv_layer_forward.1} parent=11 // pred_region
          %s267 = ssub.s32 512, 512
          %268 = vsyncadd [#allocation4], %s267
          %s269 = sshll.u32 [#allocation3], 4
          %s270 = int_to_ptr.vmem [resolvable:$true] %s269
          %275 = dma.hbm_to_vmem [thread:$0]  %s6, 512, %s270, [#allocation4], 128, 128, 8
        $region28: #{lightconv_layer_forward.1} parent=11 // pred_fallthru
          _
        // Predicated region
        $region29: #{lightconv_layer_forward.1} parent=11 // pred_check
          %p276 = pneg %p213
        $region30: #{lightconv_layer_forward.1} parent=11 // pred_check_branch
          %278 = sbr.rel (%p276) target = $region32
        $region31: #{lightconv_layer_forward.1} parent=11 // pred_region
          _
        $region32: #{lightconv_layer_forward.1} parent=11 // pred_fallthru
          _
      $region12: #{lightconv_layer_forward.1} parent=5 // pred_fallthru
        _
      %p279 = scmp.lt.s32.totalorder %s18, 3
      // Predicated region
      $region33: #{lightconv_layer_forward.1} parent=5 // pred_check
        %p280 = pneg %p279
      $region34: #{lightconv_layer_forward.1} parent=5 // pred_check_branch
        %282 = sbr.rel (%p280) target = $region36
      $region35: #{lightconv_layer_forward.1} parent=5 // pred_region
        // Predicated region
        $region37: #{lightconv_layer_forward.1} parent=35 // pred_check
          %p283 = pneg %p44
        $region38: #{lightconv_layer_forward.1} parent=35 // pred_check_branch
          %285 = sbr.rel (%p283) target = $region40
        $region39: #{lightconv_layer_forward.1} parent=35 // pred_region
          %s286 = ssub.s32 %s18, 1
          %p287 = scmp.gt.s32.totalorder %s286, 0
          %s288 = scalar_select %p287, %s286, 0
          %s289 = smul.u32 2, %s288
          %s290 = ssub.s32 5, %s289
          %p291 = scmp.lt.s32.totalorder %s290, 2
          %s292 = scalar_select %p291, %s290, 2
          %s293 = smul.u32 128, %s292
          %p294 = scmp.lt.s32.totalorder %s289, 4
          %s295 = scalar_select %p294, %s289, 4
          %s296 = smul.addr %s295, 8
          %s297 = scalar_lea.vmem %s0, %s296
          %s298 = ssub.s32 %s18, 1
          %p299 = scmp.gt.s32.totalorder %s298, 0
          %s300 = scalar_select %p299, %s298, 0
          %s301 = smul.u32 2, %s300
          %s302 = ssub.s32 5, %s301
          %p303 = scmp.lt.s32.totalorder %s302, 2
          %s304 = scalar_select %p303, %s302, 2
          %s305 = smul.u32 128, %s304
        $region40: #{lightconv_layer_forward.1} parent=35 // pred_fallthru
          _
        // Predicated region
        $region41: #{lightconv_layer_forward.1} parent=35 // pred_check
          %p306 = pneg %p70
        $region42: #{lightconv_layer_forward.1} parent=35 // pred_check_branch
          %308 = sbr.rel (%p306) target = $region44
        $region43: #{lightconv_layer_forward.1} parent=35 // pred_region
          %s309 = smul.u32 2, %s18
          %s310 = ssub.s32 5, %s309
          %p311 = scmp.lt.s32.totalorder %s310, 2
          %s312 = scalar_select %p311, %s310, 2
          %s313 = smul.u32 128, %s312
          %p314 = scmp.lt.s32.totalorder %s309, 4
          %s315 = scalar_select %p314, %s309, 4
          %s316 = smul.addr %s315, 8
          %s317 = scalar_lea.vmem %s1, %s316
          %s318 = smul.u32 2, %s18
          %s319 = ssub.s32 5, %s318
          %p320 = scmp.lt.s32.totalorder %s319, 2
          %s321 = scalar_select %p320, %s319, 2
          %s322 = smul.u32 128, %s321
        $region44: #{lightconv_layer_forward.1} parent=35 // pred_fallthru
          _
        // Predicated region
        $region45: #{lightconv_layer_forward.1} parent=35 // pred_check
          %p323 = pneg %p102
        $region46: #{lightconv_layer_forward.1} parent=35 // pred_check_branch
          %325 = sbr.rel (%p323) target = $region48
        $region47: #{lightconv_layer_forward.1} parent=35 // pred_region
          %s326 = sadd.s32 %s18, 1
          %p327 = scmp.lt.s32.totalorder %s326, 2
          %s328 = scalar_select %p327, %s326, 2
          %s329 = smul.u32 2, %s328
          %s330 = ssub.s32 5, %s329
          %p331 = scmp.lt.s32.totalorder %s330, 2
          %s332 = scalar_select %p331, %s330, 2
          %s333 = smul.u32 128, %s332
          %p334 = scmp.lt.s32.totalorder %s329, 4
          %s335 = scalar_select %p334, %s329, 4
          %s336 = smul.addr %s335, 8
          %s337 = scalar_lea.vmem %s2, %s336
          %s338 = sadd.s32 %s18, 1
          %p339 = scmp.lt.s32.totalorder %s338, 2
          %s340 = scalar_select %p339, %s338, 2
          %s341 = smul.u32 2, %s340
          %s342 = ssub.s32 5, %s341
          %p343 = scmp.lt.s32.totalorder %s342, 2
          %s344 = scalar_select %p343, %s342, 2
          %s345 = smul.u32 128, %s344
        $region48: #{lightconv_layer_forward.1} parent=35 // pred_fallthru
          _
      $region36: #{lightconv_layer_forward.1} parent=5 // pred_fallthru
        _
      %p346 = scmp.le.s32.totalorder 1, %s18
      %p347 = scmp.lt.s32.totalorder %s18, 4
      %p348 = pnand %p346, %p347
      %p349 = pneg %p348
      // Predicated region
      $region49: #{lightconv_layer_forward.1} parent=5 // pred_check
        _
      $region50: #{lightconv_layer_forward.1} parent=5 // pred_check_branch
        %351 = sbr.rel (%p348) target = $region52
      $region51: #{lightconv_layer_forward.1} parent=5 // pred_region
        %s352 = ssub.s32 %s18, 1
        // Predicated region
        $region53: #{lightconv_layer_forward.1} parent=51 // pred_check
          %p353 = pneg %p192
        $region54: #{lightconv_layer_forward.1} parent=51 // pred_check_branch
          %355 = sbr.rel (%p353) target = $region56
        $region55: #{lightconv_layer_forward.1} parent=51 // pred_region
          %356 = dma.done [#allocation4], 512
        $region56: #{lightconv_layer_forward.1} parent=51 // pred_fallthru
          _
        %s357 = ssub.s32 %s23, 1
        %p358 = scmp.gt.s32.totalorder %s357, 0
        %s359 = scalar_select %p358, %s357, 0
        %s360 = smul.u32 2, %s359
        %s361 = ssub.s32 5, %s360
        %p362 = scmp.lt.s32.totalorder %s361, 2
        %s363 = scalar_select %p362, %s361, 2
        %s364 = smul.u32 128, %s363
        %p365 = scmp.lt.s32.totalorder %s360, 4
        %s366 = scalar_select %p365, %s360, 4
        %s367 = smul.addr %s366, 8
        %s368 = scalar_lea.vmem %s0, %s367
        %p369 = pneg %p50
        %p370 = pneg %p47
        %s371 = smul.u32 2, %s23
        %s372 = ssub.s32 5, %s371
        %p373 = scmp.lt.s32.totalorder %s372, 2
        %s374 = scalar_select %p373, %s372, 2
        %s375 = smul.u32 128, %s374
        %p376 = scmp.lt.s32.totalorder %s371, 4
        %s377 = scalar_select %p376, %s371, 4
        %s378 = smul.addr %s377, 8
        %s379 = scalar_lea.vmem %s1, %s378
        %p380 = pneg %p76
        %p381 = pneg %p73
        %s382 = sadd.s32 %s23, 1
        %p383 = scmp.lt.s32.totalorder %s382, 2
        %s384 = scalar_select %p383, %s382, 2
        %s385 = smul.u32 2, %s384
        %s386 = ssub.s32 5, %s385
        %p387 = scmp.lt.s32.totalorder %s386, 2
        %s388 = scalar_select %p387, %s386, 2
        %s389 = smul.u32 128, %s388
        %p390 = scmp.lt.s32.totalorder %s385, 4
        %s391 = scalar_select %p390, %s385, 4
        %s392 = smul.addr %s391, 8
        %s393 = scalar_lea.vmem %s2, %s392
        %p394 = pneg %p108
        %p395 = pneg %p105
        %p396 = pneg %p129
        %p397 = pneg %p126
        %p398 = pneg %p150
        %p399 = pneg %p147
        %p400 = pneg %p171
        %p401 = pneg %p168
        %p402 = pneg %p192
        %p403 = pneg %p189
        %p404 = pneg %p213
        %p405 = pneg %p210
        %p406 = pneg %p239
        %p407 = pneg %p236
        %s408 = sand.u32 %s226, 1
        %s409 = scalar_lea.sflag [#allocation5], %s408
        %s410 = sand.u32 %s226, 1
        %s411 = smul.addr %s410, 16
        %s412 = scalar_lea.vmem [#allocation6], %s411
        %s413 = ssub.s32 %s23, 1
        %p414 = scmp.gt.s32.totalorder %s413, 0
        %s415 = scalar_select %p414, %s413, 0
        %s416 = smul.u32 2, %s415
        %s417 = ssub.s32 5, %s416
        %p418 = scmp.lt.s32.totalorder %s417, 2
        %s419 = scalar_select %p418, %s417, 2
        %s420 = smul.u32 128, %s419
        %p421 = scmp.lt.s32.totalorder %s416, 4
        %s422 = scalar_select %p421, %s416, 4
        %s423 = smul.addr %s422, 8
        %s424 = scalar_lea.vmem %s0, %s423
        %s425 = ssub.s32 %s23, 1
        %p426 = scmp.gt.s32.totalorder %s425, 0
        %s427 = scalar_select %p426, %s425, 0
        %s428 = smul.u32 2, %s427
        %s429 = ssub.s32 5, %s428
        %p430 = scmp.lt.s32.totalorder %s429, 2
        %s431 = scalar_select %p430, %s429, 2
        %s432 = smul.u32 128, %s431
        %s433 = smul.u32 2, %s23
        %s434 = ssub.s32 5, %s433
        %p435 = scmp.lt.s32.totalorder %s434, 2
        %s436 = scalar_select %p435, %s434, 2
        %s437 = smul.u32 128, %s436
        %p438 = scmp.lt.s32.totalorder %s433, 4
        %s439 = scalar_select %p438, %s433, 4
        %s440 = smul.addr %s439, 8
        %s441 = scalar_lea.vmem %s1, %s440
        %s442 = smul.u32 2, %s23
        %s443 = ssub.s32 5, %s442
        %p444 = scmp.lt.s32.totalorder %s443, 2
        %s445 = scalar_select %p444, %s443, 2
        %s446 = smul.u32 128, %s445
        %s447 = sadd.s32 %s23, 1
        %p448 = scmp.lt.s32.totalorder %s447, 2
        %s449 = scalar_select %p448, %s447, 2
        %s450 = smul.u32 2, %s449
        %s451 = ssub.s32 5, %s450
        %p452 = scmp.lt.s32.totalorder %s451, 2
        %s453 = scalar_select %p452, %s451, 2
        %s454 = smul.u32 128, %s453
        %p455 = scmp.lt.s32.totalorder %s450, 4
        %s456 = scalar_select %p455, %s450, 4
        %s457 = smul.addr %s456, 8
        %s458 = scalar_lea.vmem %s2, %s457
        %s459 = sadd.s32 %s23, 1
        %p460 = scmp.lt.s32.totalorder %s459, 2
        %s461 = scalar_select %p460, %s459, 2
        %s462 = smul.u32 2, %s461
        %s463 = ssub.s32 5, %s462
        %p464 = scmp.lt.s32.totalorder %s463, 2
        %s465 = scalar_select %p464, %s463, 2
        %s466 = smul.u32 128, %s465
        %s467 = smul.u32 2, %s23
        %s468 = ssub.s32 5, %s467
        %p469 = scmp.lt.s32.totalorder %s468, 2
        %s470 = scalar_select %p469, %s468, 2
        %s471 = smul.u32 128, %s470
        %v472 = vld [vmem:[%s4] sm:$0x1]
        %v473 = vld [vmem:[%s424] sm:$0xff]
        %v474 = vld [vmem:[%s424 + $0x8] sm:$0xff]
        %v475 = vld [vmem:[%s3] sm:$0xff]
        %v476 = vld [vmem:[%s3 + $0x8] sm:$0xff]
        %v477 = vld [vmem:[%s3 + $0x10] sm:$0xff]
        %v478 = vld [vmem:[%s3 + $0x18] sm:$0xff]
        %v480 = vlaneseq
        %v481 = vshrl.u32 %v480, 7
        %v482 = vsub.s32 0, %v481
        %v483 = vrot.slane %v472, %v482
        %vm485 = vcmask 261120
        %v487 = vsel %vm485, %v473, 0
        %v490 = vsel %vm485, %v474, 0
        %492 = vmatprep.subr.mxu0 0.0
        %493 = vmatpush1.msra.mxu0 %v475
        %494 = vmatprep.subr.mxu0 0.0
        %495 = vmatpush1.msra.mxu0 %v476
        %496 = vmatprep.subr.mxu0 0.0
        %497 = vmatpush1.msra.mxu0 %v477
        %498 = vmatprep.subr.mxu0 0.0
        %499 = vmatpush1.msra.mxu0 %v478
        %500 = vmatprep.subr.mxu0 0.0
        %501 = vmatpush1.msra.mxu0 0.0
        %502 = vmatprep.subr.mxu0 0.0
        %503 = vmatpush1.msra.mxu0 0.0
        %504 = vmatprep.subr.mxu0 0.0
        %505 = vmatpush1.msra.mxu0 0.0
        %506 = vmatprep.subr.mxu0 0.0
        %507 = vmatpush1.msra.mxu0 0.0
        %508 = vmatprep.subr.mxu0 0.0
        %509 = vmatpush1.msra.mxu0 0.0
        %510 = vmatprep.subr.mxu0 0.0
        %511 = vmatpush1.msra.mxu0 0.0
        %512 = vmatprep.subr.mxu0 0.0
        %513 = vmatpush1.msra.mxu0 0.0
        %514 = vmatprep.subr.mxu0 0.0
        %515 = vmatpush1.msra.mxu0 0.0
        %516 = vmatprep.subr.mxu0 0.0
        %517 = vmatpush1.msra.mxu0 0.0
        %518 = vmatprep.subr.mxu0 0.0
        %519 = vmatpush1.msra.mxu0 0.0
        %520 = vmatprep.subr.mxu0 0.0
        %521 = vmatpush1.msra.mxu0 0.0
        %522 = vmatprep.subr.mxu0 0.0
        %523 = vmatpush1.msra.mxu0 0.0
        %524 = vmatprep.subr.mxu0 0.0
        %525 = vmatpush1.msra.mxu0 0.0
        %526 = vmatprep.subr.mxu0 0.0
        %527 = vmatpush1.msra.mxu0 0.0
        %528 = vmatprep.subr.mxu0 0.0
        %529 = vmatpush1.msra.mxu0 0.0
        %530 = vmatprep.subr.mxu0 0.0
        %531 = vmatpush1.msra.mxu0 0.0
        %532 = vmatprep.subr.mxu0 0.0
        %533 = vmatpush1.msra.mxu0 0.0
        %534 = vmatprep.subr.mxu0 0.0
        %535 = vmatpush1.msra.mxu0 0.0
        %536 = vmatprep.subr.mxu0 0.0
        %537 = vmatpush1.msra.mxu0 0.0
        %538 = vmatprep.subr.mxu0 0.0
        %539 = vmatpush1.msra.mxu0 0.0
        %540 = vmatprep.subr.mxu0 0.0
        %541 = vmatpush1.msra.mxu0 0.0
        %542 = vmatprep.subr.mxu0 0.0
        %543 = vmatpush1.msra.mxu0 0.0
        %544 = vmatprep.subr.mxu0 0.0
        %545 = vmatpush1.msra.mxu0 0.0
        %546 = vmatprep.subr.mxu0 0.0
        %547 = vmatpush1.msra.mxu0 0.0
        %548 = vmatprep.subr.mxu0 0.0
        %549 = vmatpush1.msra.mxu0 0.0
        %550 = vmatprep.subr.mxu0 0.0
        %551 = vmatpush1.msra.mxu0 0.0
        %552 = vmatprep.subr.mxu0 0.0
        %553 = vmatpush1.msra.mxu0 0.0
        %554 = vmatprep.subr.mxu0 0.0
        %555 = vmatpush1.msra.mxu0 0.0
        %556 = vmatprep.mubr.f32.mxu0 0.0
        %557 = vmatmul.mubr.f32.gmra.mrb[0].mxu0 %v487
        %v558 = vpop.f32.mrb[0].mxu0
        %v559 = vadd.f32 %v483, %v558
        %v560 = vpop.f32.mrb[0].mxu0
        %561 = vmatprep.mubr.f32.mxu0 0.0
        %562 = vmatmul.mubr.f32.gmra.mrb[0].mxu0 %v490
        %v563 = vpop.f32.mrb[0].mxu0
        %v564 = vadd.f32 %v483, %v563
        %v565 = vpop.f32.mrb[0].mxu0
        %566 = vdwg.mxu0
        %567 = vst.msk [vmem:[#allocation2] sm:$0xff] %vm485, %v559
        %568 = vst.msk [vmem:[#allocation2 + $0x8] sm:$0xff] %vm485, %v564
        %v569 = vld [vmem:[%s441] sm:$0xff]
        %v570 = vld [vmem:[%s441 + $0x8] sm:$0xff]
        %v571 = vld [vmem:[%s3] sm:$0xff]
        %v572 = vld [vmem:[%s3 + $0x8] sm:$0xff]
        %v573 = vld [vmem:[%s3 + $0x10] sm:$0xff]
        %v574 = vld [vmem:[%s3 + $0x18] sm:$0xff]
        %v576 = vsel %vm485, %v569, 0
        %v579 = vsel %vm485, %v570, 0
        %581 = vmatprep.subr.mxu0 0.0
        %582 = vmatpush1.msra.mxu0 %v571
        %583 = vmatprep.subr.mxu0 0.0
        %584 = vmatpush1.msra.mxu0 %v572
        %585 = vmatprep.subr.mxu0 0.0
        %586 = vmatpush1.msra.mxu0 %v573
        %587 = vmatprep.subr.mxu0 0.0
        %588 = vmatpush1.msra.mxu0 %v574
        %589 = vmatprep.subr.mxu0 0.0
        %590 = vmatpush1.msra.mxu0 0.0
        %591 = vmatprep.subr.mxu0 0.0
        %592 = vmatpush1.msra.mxu0 0.0
        %593 = vmatprep.subr.mxu0 0.0
        %594 = vmatpush1.msra.mxu0 0.0
        %595 = vmatprep.subr.mxu0 0.0
        %596 = vmatpush1.msra.mxu0 0.0
        %597 = vmatprep.subr.mxu0 0.0
        %598 = vmatpush1.msra.mxu0 0.0
        %599 = vmatprep.subr.mxu0 0.0
        %600 = vmatpush1.msra.mxu0 0.0
        %601 = vmatprep.subr.mxu0 0.0
        %602 = vmatpush1.msra.mxu0 0.0
        %603 = vmatprep.subr.mxu0 0.0
        %604 = vmatpush1.msra.mxu0 0.0
        %605 = vmatprep.subr.mxu0 0.0
        %606 = vmatpush1.msra.mxu0 0.0
        %607 = vmatprep.subr.mxu0 0.0
        %608 = vmatpush1.msra.mxu0 0.0
        %609 = vmatprep.subr.mxu0 0.0
        %610 = vmatpush1.msra.mxu0 0.0
        %611 = vmatprep.subr.mxu0 0.0
        %612 = vmatpush1.msra.mxu0 0.0
        %613 = vmatprep.subr.mxu0 0.0
        %614 = vmatpush1.msra.mxu0 0.0
        %615 = vmatprep.subr.mxu0 0.0
        %616 = vmatpush1.msra.mxu0 0.0
        %617 = vmatprep.subr.mxu0 0.0
        %618 = vmatpush1.msra.mxu0 0.0
        %619 = vmatprep.subr.mxu0 0.0
        %620 = vmatpush1.msra.mxu0 0.0
        %621 = vmatprep.subr.mxu0 0.0
        %622 = vmatpush1.msra.mxu0 0.0
        %623 = vmatprep.subr.mxu0 0.0
        %624 = vmatpush1.msra.mxu0 0.0
        %625 = vmatprep.subr.mxu0 0.0
        %626 = vmatpush1.msra.mxu0 0.0
        %627 = vmatprep.subr.mxu0 0.0
        %628 = vmatpush1.msra.mxu0 0.0
        %629 = vmatprep.subr.mxu0 0.0
        %630 = vmatpush1.msra.mxu0 0.0
        %631 = vmatprep.subr.mxu0 0.0
        %632 = vmatpush1.msra.mxu0 0.0
        %633 = vmatprep.subr.mxu0 0.0
        %634 = vmatpush1.msra.mxu0 0.0
        %635 = vmatprep.subr.mxu0 0.0
        %636 = vmatpush1.msra.mxu0 0.0
        %637 = vmatprep.subr.mxu0 0.0
        %638 = vmatpush1.msra.mxu0 0.0
        %639 = vmatprep.subr.mxu0 0.0
        %640 = vmatpush1.msra.mxu0 0.0
        %641 = vmatprep.subr.mxu0 0.0
        %642 = vmatpush1.msra.mxu0 0.0
        %643 = vmatprep.subr.mxu0 0.0
        %644 = vmatpush1.msra.mxu0 0.0
        %645 = vmatprep.mubr.f32.mxu0 0.0
        %646 = vmatmul.mubr.f32.gmra.mrb[0].mxu0 %v576
        %v647 = vpop.f32.mrb[0].mxu0
        %v648 = vadd.f32 %v483, %v647
        %v649 = vpop.f32.mrb[0].mxu0
        %650 = vmatprep.mubr.f32.mxu0 0.0
        %651 = vmatmul.mubr.f32.gmra.mrb[0].mxu0 %v579
        %v652 = vpop.f32.mrb[0].mxu0
        %v653 = vadd.f32 %v483, %v652
        %v654 = vpop.f32.mrb[0].mxu0
        %655 = vdwg.mxu0
        %656 = vst.msk [vmem:[#allocation2 + $0x10] sm:$0xff] %vm485, %v648
        %657 = vst.msk [vmem:[#allocation2 + $0x18] sm:$0xff] %vm485, %v653
        %v658 = vld [vmem:[%s458] sm:$0xff]
        %v659 = vld [vmem:[%s458 + $0x8] sm:$0xff]
        %v660 = vld [vmem:[%s3] sm:$0xff]
        %v661 = vld [vmem:[%s3 + $0x8] sm:$0xff]
        %v662 = vld [vmem:[%s3 + $0x10] sm:$0xff]
        %v663 = vld [vmem:[%s3 + $0x18] sm:$0xff]
        %v665 = vsel %vm485, %v658, 0
        %v668 = vsel %vm485, %v659, 0
        %670 = vmatprep.subr.mxu0 0.0
        %671 = vmatpush1.msra.mxu0 %v660
        %672 = vmatprep.subr.mxu0 0.0
        %673 = vmatpush1.msra.mxu0 %v661
        %674 = vmatprep.subr.mxu0 0.0
        %675 = vmatpush1.msra.mxu0 %v662
        %676 = vmatprep.subr.mxu0 0.0
        %677 = vmatpush1.msra.mxu0 %v663
        %678 = vmatprep.subr.mxu0 0.0
        %679 = vmatpush1.msra.mxu0 0.0
        %680 = vmatprep.subr.mxu0 0.0
        %681 = vmatpush1.msra.mxu0 0.0
        %682 = vmatprep.subr.mxu0 0.0
        %683 = vmatpush1.msra.mxu0 0.0
        %684 = vmatprep.subr.mxu0 0.0
        %685 = vmatpush1.msra.mxu0 0.0
        %686 = vmatprep.subr.mxu0 0.0
        %687 = vmatpush1.msra.mxu0 0.0
        %688 = vmatprep.subr.mxu0 0.0
        %689 = vmatpush1.msra.mxu0 0.0
        %690 = vmatprep.subr.mxu0 0.0
        %691 = vmatpush1.msra.mxu0 0.0
        %692 = vmatprep.subr.mxu0 0.0
        %693 = vmatpush1.msra.mxu0 0.0
        %694 = vmatprep.subr.mxu0 0.0
        %695 = vmatpush1.msra.mxu0 0.0
        %696 = vmatprep.subr.mxu0 0.0
        %697 = vmatpush1.msra.mxu0 0.0
        %698 = vmatprep.subr.mxu0 0.0
        %699 = vmatpush1.msra.mxu0 0.0
        %700 = vmatprep.subr.mxu0 0.0
        %701 = vmatpush1.msra.mxu0 0.0
        %702 = vmatprep.subr.mxu0 0.0
        %703 = vmatpush1.msra.mxu0 0.0
        %704 = vmatprep.subr.mxu0 0.0
        %705 = vmatpush1.msra.mxu0 0.0
        %706 = vmatprep.subr.mxu0 0.0
        %707 = vmatpush1.msra.mxu0 0.0
        %708 = vmatprep.subr.mxu0 0.0
        %709 = vmatpush1.msra.mxu0 0.0
        %710 = vmatprep.subr.mxu0 0.0
        %711 = vmatpush1.msra.mxu0 0.0
        %712 = vmatprep.subr.mxu0 0.0
        %713 = vmatpush1.msra.mxu0 0.0
        %714 = vmatprep.subr.mxu0 0.0
        %715 = vmatpush1.msra.mxu0 0.0
        %716 = vmatprep.subr.mxu0 0.0
        %717 = vmatpush1.msra.mxu0 0.0
        %718 = vmatprep.subr.mxu0 0.0
        %719 = vmatpush1.msra.mxu0 0.0
        %720 = vmatprep.subr.mxu0 0.0
        %721 = vmatpush1.msra.mxu0 0.0
        %722 = vmatprep.subr.mxu0 0.0
        %723 = vmatpush1.msra.mxu0 0.0
        %724 = vmatprep.subr.mxu0 0.0
        %725 = vmatpush1.msra.mxu0 0.0
        %726 = vmatprep.subr.mxu0 0.0
        %727 = vmatpush1.msra.mxu0 0.0
        %728 = vmatprep.subr.mxu0 0.0
        %729 = vmatpush1.msra.mxu0 0.0
        %730 = vmatprep.subr.mxu0 0.0
        %731 = vmatpush1.msra.mxu0 0.0
        %732 = vmatprep.subr.mxu0 0.0
        %733 = vmatpush1.msra.mxu0 0.0
        %734 = vmatprep.mubr.f32.mxu0 0.0
        %735 = vmatmul.mubr.f32.gmra.mrb[0].mxu0 %v665
        %v736 = vpop.f32.mrb[0].mxu0
        %v737 = vadd.f32 %v483, %v736
        %v738 = vpop.f32.mrb[0].mxu0
        %739 = vmatprep.mubr.f32.mxu0 0.0
        %740 = vmatmul.mubr.f32.gmra.mrb[0].mxu0 %v668
        %v741 = vpop.f32.mrb[0].mxu0
        %v742 = vadd.f32 %v483, %v741
        %v743 = vpop.f32.mrb[0].mxu0
        %744 = vdwg.mxu0
        %745 = vst.msk [vmem:[#allocation2 + $0x20] sm:$0xff] %vm485, %v737
        %746 = vst.msk [vmem:[#allocation2 + $0x28] sm:$0xff] %vm485, %v742
        %p747 = scmp.eq.s32.totalorder %s23, 0
        // Predicated region
        $region57: #{lightconv_layer_forward.1} parent=51 // pred_check
          %p748 = pneg %p747
        $region58: #{lightconv_layer_forward.1} parent=51 // pred_check_branch
          %750 = sbr.rel (%p748) target = $region60
        $region59: #{lightconv_layer_forward.1} parent=51 // pred_region
          %751 = vst.msk [vmem:[#allocation2] sm:$0xff] %vm485, 0.0
          %752 = vst.msk [vmem:[#allocation2 + $0x8] sm:$0xff] %vm485, 0.0
        $region60: #{lightconv_layer_forward.1} parent=51 // pred_fallthru
          _
        %s753 = smul.u32 %s23, 16
        %s754 = ssub.s32 %s753, 16
        %s755 = sadd.s32 %s753, 32
        %p756 = scmp.gt.s32.totalorder %s755, 40
        // Predicated region
        $region61: #{lightconv_layer_forward.1} parent=51 // pred_check
          %p757 = pneg %p756
        $region62: #{lightconv_layer_forward.1} parent=51 // pred_check_branch
          %759 = sbr.rel (%p757) target = $region64
        $region63: #{lightconv_layer_forward.1} parent=51 // pred_region
          %v760 = vlaneseq
          %v761 = vshrl.u32 %v760, 7
          %v762 = vadd.s32 %v761, 8
          %v763 = vadd.s32 %v761, 16
          %v764 = vadd.s32 %v761, 24
          %v765 = vadd.s32 %v761, 32
          %v766 = vadd.s32 %v761, 40
          %v767 = vstv %s754
          %v768 = vadd.s32 %v767, %v761
          %v769 = vadd.s32 %v767, %v762
          %v770 = vadd.s32 %v767, %v763
          %v771 = vadd.s32 %v767, %v764
          %v772 = vadd.s32 %v767, %v765
          %v773 = vadd.s32 %v767, %v766
          %vm774 = vcmp.lt.s32.totalorder %v768, 40
          %vm775 = vcmp.lt.s32.totalorder %v769, 40
          %vm776 = vcmp.lt.s32.totalorder %v770, 40
          %vm777 = vcmp.lt.s32.totalorder %v771, 40
          %vm778 = vcmp.lt.s32.totalorder %v772, 40
          %vm779 = vcmp.lt.s32.totalorder %v773, 40
          %v780 = vld [vmem:[#allocation2] sm:$0xff]
          %v781 = vld [vmem:[#allocation2 + $0x8] sm:$0xff]
          %v782 = vld [vmem:[#allocation2 + $0x10] sm:$0xff]
          %v783 = vld [vmem:[#allocation2 + $0x18] sm:$0xff]
          %v784 = vld [vmem:[#allocation2 + $0x20] sm:$0xff]
          %v785 = vld [vmem:[#allocation2 + $0x28] sm:$0xff]
          %v786 = vsel %vm774, %v780, 0.0
          %v787 = vsel %vm775, %v781, 0.0
          %v788 = vsel %vm776, %v782, 0.0
          %v789 = vsel %vm777, %v783, 0.0
          %v790 = vsel %vm778, %v784, 0.0
          %v791 = vsel %vm779, %v785, 0.0
          %792 = vst.msk [vmem:[#allocation2] sm:$0xff] %vm485, %v786
          %793 = vst.msk [vmem:[#allocation2 + $0x8] sm:$0xff] %vm485, %v787
          %794 = vst.msk [vmem:[#allocation2 + $0x10] sm:$0xff] %vm485, %v788
          %795 = vst.msk [vmem:[#allocation2 + $0x18] sm:$0xff] %vm485, %v789
          %796 = vst.msk [vmem:[#allocation2 + $0x20] sm:$0xff] %vm485, %v790
          %797 = vst.msk [vmem:[#allocation2 + $0x28] sm:$0xff] %vm485, %v791
        $region64: #{lightconv_layer_forward.1} parent=51 // pred_fallthru
          _
        %v798 = vld [vmem:[#allocation2 + $0xa] sm:$0xff]
        %v799 = vld [vmem:[#allocation2 + $0x12] sm:$0xff]
        %v800 = vld [vmem:[%s5] sm:$0x1]
        %v801 = vlaneseq
        %v802 = vshrl.u32 %v801, 7
        %v803 = vsub.s32 0, %v802
        %v804 = vrot.slane %v800, %v803
        %v805 = vmul.f32 %v798, %v804
        %v806 = vmul.f32 %v799, %v804
        %v807 = vld [vmem:[#allocation2 + $0xc] sm:$0xff]
        %v808 = vld [vmem:[#allocation2 + $0x14] sm:$0xff]
        %v809 = vld [vmem:[%s5 + $0x1] sm:$0x1]
        %v810 = vlaneseq
        %v811 = vshrl.u32 %v810, 7
        %v812 = vsub.s32 0, %v811
        %v813 = vrot.slane %v809, %v812
        %v814 = vmul.f32 %v807, %v813
        %v815 = vmul.f32 %v808, %v813
        %v816 = vadd.f32 %v805, %v814
        %v817 = vadd.f32 %v806, %v815
        %v818 = vld [vmem:[#allocation2 + $0xe] sm:$0xff]
        %v819 = vld [vmem:[#allocation2 + $0x16] sm:$0xff]
        %v820 = vld [vmem:[%s5 + $0x2] sm:$0x1]
        %v821 = vlaneseq
        %v822 = vshrl.u32 %v821, 7
        %v823 = vsub.s32 0, %v822
        %v824 = vrot.slane %v820, %v823
        %v825 = vmul.f32 %v818, %v824
        %v826 = vmul.f32 %v819, %v824
        %v827 = vadd.f32 %v816, %v825
        %v828 = vadd.f32 %v817, %v826
        %v829 = vld [vmem:[#allocation2 + $0x10] sm:$0xff]
        %v830 = vld [vmem:[#allocation2 + $0x18] sm:$0xff]
        %v831 = vld [vmem:[%s5 + $0x3] sm:$0x1]
        %v832 = vlaneseq
        %v833 = vshrl.u32 %v832, 7
        %v834 = vsub.s32 0, %v833
        %v835 = vrot.slane %v831, %v834
        %v836 = vmul.f32 %v829, %v835
        %v837 = vmul.f32 %v830, %v835
        %v838 = vadd.f32 %v827, %v836
        %v839 = vadd.f32 %v828, %v837
        %v840 = vld [vmem:[#allocation3] sm:$0xff]
        %v841 = vld [vmem:[#allocation3 + $0x8] sm:$0xff]
        %v842 = vld [vmem:[#allocation3 + $0x10] sm:$0xff]
        %v843 = vld [vmem:[#allocation3 + $0x18] sm:$0xff]
        %v844 = vld [vmem:[%s7] sm:$0x1]
        %v846 = vlaneseq
        %v847 = vshrl.u32 %v846, 7
        %v848 = vsub.s32 0, %v847
        %v849 = vrot.slane %v844, %v848
        %v852 = vsel %vm485, %v838, 0
        %v855 = vsel %vm485, %v839, 0
        %857 = vmatprep.subr.mxu0 0.0
        %858 = vmatpush1.msra.mxu0 %v840
        %859 = vmatprep.subr.mxu0 0.0
        %860 = vmatpush1.msra.mxu0 %v841
        %861 = vmatprep.subr.mxu0 0.0
        %862 = vmatpush1.msra.mxu0 %v842
        %863 = vmatprep.subr.mxu0 0.0
        %864 = vmatpush1.msra.mxu0 %v843
        %865 = vmatprep.subr.mxu0 0.0
        %866 = vmatpush1.msra.mxu0 0.0
        %867 = vmatprep.subr.mxu0 0.0
        %868 = vmatpush1.msra.mxu0 0.0
        %869 = vmatprep.subr.mxu0 0.0
        %870 = vmatpush1.msra.mxu0 0.0
        %871 = vmatprep.subr.mxu0 0.0
        %872 = vmatpush1.msra.mxu0 0.0
        %873 = vmatprep.subr.mxu0 0.0
        %874 = vmatpush1.msra.mxu0 0.0
        %875 = vmatprep.subr.mxu0 0.0
        %876 = vmatpush1.msra.mxu0 0.0
        %877 = vmatprep.subr.mxu0 0.0
        %878 = vmatpush1.msra.mxu0 0.0
        %879 = vmatprep.subr.mxu0 0.0
        %880 = vmatpush1.msra.mxu0 0.0
        %881 = vmatprep.subr.mxu0 0.0
        %882 = vmatpush1.msra.mxu0 0.0
        %883 = vmatprep.subr.mxu0 0.0
        %884 = vmatpush1.msra.mxu0 0.0
        %885 = vmatprep.subr.mxu0 0.0
        %886 = vmatpush1.msra.mxu0 0.0
        %887 = vmatprep.subr.mxu0 0.0
        %888 = vmatpush1.msra.mxu0 0.0
        %889 = vmatprep.subr.mxu0 0.0
        %890 = vmatpush1.msra.mxu0 0.0
        %891 = vmatprep.subr.mxu0 0.0
        %892 = vmatpush1.msra.mxu0 0.0
        %893 = vmatprep.subr.mxu0 0.0
        %894 = vmatpush1.msra.mxu0 0.0
        %895 = vmatprep.subr.mxu0 0.0
        %896 = vmatpush1.msra.mxu0 0.0
        %897 = vmatprep.subr.mxu0 0.0
        %898 = vmatpush1.msra.mxu0 0.0
        %899 = vmatprep.subr.mxu0 0.0
        %900 = vmatpush1.msra.mxu0 0.0
        %901 = vmatprep.subr.mxu0 0.0
        %902 = vmatpush1.msra.mxu0 0.0
        %903 = vmatprep.subr.mxu0 0.0
        %904 = vmatpush1.msra.mxu0 0.0
        %905 = vmatprep.subr.mxu0 0.0
        %906 = vmatpush1.msra.mxu0 0.0
        %907 = vmatprep.subr.mxu0 0.0
        %908 = vmatpush1.msra.mxu0 0.0
        %909 = vmatprep.subr.mxu0 0.0
        %910 = vmatpush1.msra.mxu0 0.0
        %911 = vmatprep.subr.mxu0 0.0
        %912 = vmatpush1.msra.mxu0 0.0
        %913 = vmatprep.subr.mxu0 0.0
        %914 = vmatpush1.msra.mxu0 0.0
        %915 = vmatprep.subr.mxu0 0.0
        %916 = vmatpush1.msra.mxu0 0.0
        %917 = vmatprep.subr.mxu0 0.0
        %918 = vmatpush1.msra.mxu0 0.0
        %919 = vmatprep.subr.mxu0 0.0
        %920 = vmatpush1.msra.mxu0 0.0
        %921 = vmatprep.mubr.f32.mxu0 0.0
        %922 = vmatmul.mubr.f32.gmra.mrb[0].mxu0 %v852
        %v923 = vpop.f32.mrb[0].mxu0
        %v924 = vadd.f32 %v849, %v923
        %v925 = vpop.f32.mrb[0].mxu0
        %926 = vmatprep.mubr.f32.mxu0 0.0
        %927 = vmatmul.mubr.f32.gmra.mrb[0].mxu0 %v855
        %v928 = vpop.f32.mrb[0].mxu0
        %v929 = vadd.f32 %v849, %v928
        %v930 = vpop.f32.mrb[0].mxu0
        %931 = vdwg.mxu0
        %932 = vst.msk [vmem:[%s412] sm:$0xff] %vm485, %v924
        %933 = vst.msk [vmem:[%s412 + $0x8] sm:$0xff] %vm485, %v929
        %s934 = sand.u32 %s226, 1
        %s935 = scalar_lea.sflag [#allocation5], %s934
        %s936 = sand.u32 %s226, 1
        %s937 = smul.addr %s936, 16
        %s938 = scalar_lea.vmem [#allocation6], %s937
        // Predicated region
        $region65: #{lightconv_layer_forward.1} parent=51 // pred_check
          %p939 = pneg %p236
        $region66: #{lightconv_layer_forward.1} parent=51 // pred_check_branch
          %941 = sbr.rel (%p939) target = $region68
        $region67: #{lightconv_layer_forward.1} parent=51 // pred_region
          %s942 = smul.u32 2, %s23
          %s943 = ssub.s32 5, %s942
          %p944 = scmp.lt.s32.totalorder %s943, 2
          %s945 = scalar_select %p944, %s943, 2
          %s946 = smul.u32 128, %s945
          %s948 = ssub.s32 256, %s946
          %949 = vsyncadd %s935, %s948
          %p950 = scmp.ne.s32.totalorder 0, %s946
          %s951 = smul.addr %s942, 128
          %s952 = scalar_lea.hbm %s8, %s951
          %s953 = smul.u32 8, %s945
          %s954 = sshll.u32 %s938, 4
          %s955 = int_to_ptr.vmem [resolvable:$true] %s954
          %s956 = sshll.u32 %s953, 4
          %960 = dma.vmem_to_hbm [thread:$0]  (%p950), %s955, %s956, %s952, %s935, 128, 128, 8
        $region68: #{lightconv_layer_forward.1} parent=51 // pred_fallthru
          _
      $region52: #{lightconv_layer_forward.1} parent=5 // pred_fallthru
        _
      %p961 = scmp.le.s32.totalorder 2, %s18
      // Predicated region
      $region69: #{lightconv_layer_forward.1} parent=5 // pred_check
        %p962 = pneg %p961
      $region70: #{lightconv_layer_forward.1} parent=5 // pred_check_branch
        %964 = sbr.rel (%p962) target = $region72
      $region71: #{lightconv_layer_forward.1} parent=5 // pred_region
        %s965 = ssub.s32 %s18, 2
        // Predicated region
        $region73: #{lightconv_layer_forward.1} parent=71 // pred_check
          %p966 = pneg %p242
        $region74: #{lightconv_layer_forward.1} parent=71 // pred_check_branch
          %968 = sbr.rel (%p966) target = $region76
        $region75: #{lightconv_layer_forward.1} parent=71 // pred_region
          %s969 = sand.u32 %s227, 1
          %s970 = scalar_lea.sflag [#allocation5], %s969
          %s971 = sand.u32 %s227, 1
          %s972 = smul.addr %s971, 16
          %s973 = scalar_lea.vmem [#allocation6], %s972
          %974 = dma.done %s970, 256
        $region76: #{lightconv_layer_forward.1} parent=71 // pred_fallthru
          _
      $region72: #{lightconv_layer_forward.1} parent=5 // pred_fallthru
        _
    $region6: #{lightconv_layer_forward.1} parent=1 // loop_footer
      %s22 = sadd.s32 1, %s18
    $region7: #{lightconv_layer_forward.1} parent=1 // loop_footer_branch
      %17 = sbr.rel target = $region3
    $region8: #{lightconv_layer_forward.1} parent=1 // loop_exit
      _
    %975 = vsyncpa [#allocation4], 1
    %s976 = scalar_lea.sflag [#allocation4], 1
    %977 = vsyncpa %s976, 1
    %978 = vsyncpa [#allocation5], 1
    %s979 = scalar_lea.sflag [#allocation5], 1
    %980 = vsyncpa %s979, 1

</llo_original>
